<compile_context>
chip_gen: v7x
topology: tpu7x:2x2x1
jax: 0.10.0
libtpu: 0.0.40
codegen_flags: <defaults>
</compile_context>

<pallas_src>
import jax
import jax.numpy as jnp
from jax.experimental import pallas as pl
from jax.experimental.pallas import tpu as pltpu

K = 52
N = 52
TM_DEFAULT = 4096  # M tile; ~4-5 MiB of double-buffered VMEM tiles, fits v5e default


def linear_relu_kernel(x_ref, wt_ref, o_ref):
    # x_ref: (tm, K) bf16, wt_ref: (K, N) bf16, o_ref: (tm, N) bf16
    acc = jnp.dot(x_ref[...], wt_ref[...], preferred_element_type=jnp.float32)
    o_ref[...] = jnp.maximum(acc, 0.0).astype(o_ref.dtype)


def _linear_relu_impl(x, wt):
    """x: (M, K) bf16, wt: (K, N) bf16 (pre-transposed). Returns (M, N) bf16."""
    M = x.shape[0]
    # Single tile for small M (tm == full dim satisfies the (8,128) rule);
    # otherwise tile at TM_DEFAULT, giving >= 2 tiles (v7x megacore sharding)
    # with Pallas clamping the ragged last block.
    tm = M if M <= TM_DEFAULT else TM_DEFAULT
    grid_m = pl.cdiv(M, tm)

    return pl.pallas_call(
        linear_relu_kernel,
        out_shape=jax.ShapeDtypeStruct((M, N), x.dtype),
        grid=(grid_m,),
        in_specs=[
            pl.BlockSpec((tm, K), lambda i: (i, 0)),   # stream x over M
            pl.BlockSpec((K, N), lambda i: (0, 0)),    # weight VMEM-resident
        ],
        out_specs=pl.BlockSpec((tm, N), lambda i: (i, 0)),
        compiler_params=pltpu.CompilerParams(
            dimension_semantics=("parallel",)  # lets v7x split M tiles over 2 TCs
        ),
    )(x, wt)


# jit the whole forward path (pallas_call + any glue) into one executable.
linear_relu = jax.jit(_linear_relu_impl)


class ModelPallas:
    """JAX/Pallas port of the PyTorch Model (only `linear` + `relu` used in forward)."""

    def __init__(self, key):
        k1, k2 = jax.random.split(key)
        bound = 1.0 / (K ** 0.5)
        # torch.nn.Linear(K, N, bias=False): weight shape (N, K), U(-1/sqrt(K), 1/sqrt(K))
        self.w1 = jax.random.uniform(
            k1, (N, K), minval=-bound, maxval=bound, dtype=jnp.float32
        ).astype(jnp.bfloat16)
        # linear2 exists in the module but is unused in forward; kept for parity.
        self.w2 = jax.random.uniform(
            k2, (N, K), minval=-bound, maxval=bound, dtype=jnp.float32
        ).astype(jnp.bfloat16)
        # Hoist the transpose out of the hot path: (N, K) -> (K, N), unpadded.
        self.w1_t = jnp.asarray(self.w1.T)

    def forward(self, x, x2):
        # x2 is ignored, exactly like the reference forward.
        return linear_relu(x, self.w1_t)


if __name__ == "__main__":
    key = jax.random.PRNGKey(0)
    kx, kx2, kw = jax.random.split(key, 3)

    M = 8
    x = jax.random.normal(kx, (M, K), dtype=jnp.float32).astype(jnp.bfloat16)
    x2 = jax.random.normal(kx2, (M, K), dtype=jnp.float32).astype(jnp.bfloat16)

    model = ModelPallas(kw)
    out = model.forward(x, x2)
    out = jax.block_until_ready(out)

    # Reference check in plain JAX (f32 accumulate, relu, cast to bf16).
    ref = jnp.maximum(
        jnp.dot(x.astype(jnp.float32), model.w1.T.astype(jnp.float32)), 0.0
    ).astype(jnp.bfloat16)
    assert out.shape == (M, N) and out.dtype == jnp.bfloat16
    assert jnp.allclose(
        out.astype(jnp.float32), ref.astype(jnp.float32), atol=1e-2, rtol=1e-2
    )

    print("KERNEL_OK")
</pallas_src>

<mosaic_0001>
module attributes {stable_mosaic.version = 11 : i64} {
  func.func @linear_relu_kernel(%arg0: i32, %arg1: memref<8x52xbf16, #tpu.memory_space<vmem>>, %arg2: memref<52x52xbf16, #tpu.memory_space<vmem>>, %arg3: memref<8x52xbf16, #tpu.memory_space<vmem>>) attributes {dimension_semantics = [#tpu.dimension_semantics<parallel>], iteration_bounds = array<i64: 1>, scalar_prefetch = 0 : i64, scratch_operands = 0 : i64, tpu.core_type = #tpu.core_type<tc>, window_params = [{transform_indices = @transform_0, window_bounds = array<i64: 8, 52>}, {pipeline_mode = #tpu.pipeline_mode<synchronous>, transform_indices = @transform_1, window_bounds = array<i64: 52, 52>}, {transform_indices = @transform_2, window_bounds = array<i64: 8, 52>}]} {
    %c0 = arith.constant 0 : index
    %c0_0 = arith.constant 0 : index
    %0 = vector.load %arg1[%c0, %c0_0] : memref<8x52xbf16, #tpu.memory_space<vmem>>, vector<8x52xbf16>
    %c0_1 = arith.constant 0 : index
    %c0_2 = arith.constant 0 : index
    %1 = vector.load %arg2[%c0_1, %c0_2] : memref<52x52xbf16, #tpu.memory_space<vmem>>, vector<52x52xbf16>
    %cst = arith.constant dense<0.000000e+00> : vector<8x52xf32>
    %2 = tpu.matmul %0, %1, %cst {dimension_numbers = #tpu.dot_dimension_numbers<[1], [0], [0], [1], [0, 0, 1, 1], [], []>} : vector<8x52xbf16>, vector<52x52xbf16>, vector<8x52xf32> -> vector<8x52xf32>
    %cst_3 = arith.constant 0.000000e+00 : f32
    %3 = vector.broadcast %cst_3 : f32 to vector<8x52xf32>
    %4 = arith.maximumf %2, %3 : vector<8x52xf32>
    %5 = arith.truncf %4 : vector<8x52xf32> to vector<8x52xbf16>
    %c0_4 = arith.constant 0 : index
    %c0_5 = arith.constant 0 : index
    %6 = vector.load %arg3[%c0_4, %c0_5] : memref<8x52xbf16, #tpu.memory_space<vmem>>, vector<8x52xbf16>
    tpu.vector_store %arg3[%c0_4, %c0_5], %5 {strides = array<i32>} : memref<8x52xbf16, #tpu.memory_space<vmem>>, vector<8x52xbf16>,
    return
  }
  func.func @transform_0(%arg0: i32) -> (i32, i32) {
    %c0_i32 = arith.constant 0 : i32
    %c0_i32_0 = arith.constant 0 : i32
    return %arg0, %c0_i32 : i32, i32
  }
  func.func @transform_1(%arg0: i32) -> (i32, i32) {
    %c0_i32 = arith.constant 0 : i32
    %c0_i32_0 = arith.constant 0 : i32
    %c0_i32_1 = arith.constant 0 : i32
    return %c0_i32, %c0_i32_0 : i32, i32
  }
  func.func @transform_2(%arg0: i32) -> (i32, i32) {
    %c0_i32 = arith.constant 0 : i32
    %c0_i32_0 = arith.constant 0 : i32
    return %arg0, %c0_i32 : i32, i32
  }
}

</mosaic_0001>

<llo_original>
// kernel: _linear_relu_impl.1
$region0: #{_linear_relu_impl.1}
  #allocation0 [shape = 'u32[]', space=smem, size = 0x4, offset = 0x4, fixed_abs, tag = 'smem constant byte address 0x4 - core index']
  #allocation1 [shape = 'u32[144,128]{1,0:T(1,128)}', space=vmem, size = 0x12000, scoped, tag = 'internal scratch']
  %s0 = inlined_call_operand.hbm [shape: bf16[8,52], index: 0, kind: input, shape index: {}]
  %s1 = inlined_call_operand.hbm [shape: bf16[52,52], index: 1, kind: input, shape index: {}]
  %s2 = inlined_call_operand.hbm [shape: bf16[8,52], index: 2, kind: output, shape index: {}]
  %s3 = sld [smem:[#allocation0]]
  $region26: #{_linear_relu_impl.1} parent=0
    _
  %s5 = ssub.s32 1, %s3
  %s6 = scalar_select 0, %s5, %s3
  $region1: #{_linear_relu_impl.1} parent=0
    #allocation2 [shape = 'u8[2048]{0}', space=vmem, size = 0x800, scoped, tag = 'input window, operand 0, single buffered']
    #allocation3 [shape = 's32[1]{0}', space=sflag, size = 0x4, scoped, tag = 'scoped memory for _linear_relu_impl.1']
    #allocation4 [shape = 's32[1]{0}', space=sflag, size = 0x4, scoped, tag = 'scoped memory for _linear_relu_impl.1']
    #allocation5 [shape = 'u8[14336]{0}', space=vmem, size = 0x3800, scoped, tag = 'input window, operand 1, single buffered']
    #allocation6 [shape = 's32[1]{0}', space=sflag, size = 0x4, scoped, tag = 'scoped memory for _linear_relu_impl.1']
    #allocation7 [shape = 'u8[2048]{0}', space=vmem, size = 0x800, scoped, tag = 'output window, operand 0, single buffered']
    %7 = vsyncpa [#allocation3], 0
    %8 = vsyncpa [#allocation6], 0
    %9 = vsyncpa [#allocation4], 0
    // Predicated region
    $region2: #{_linear_relu_impl.1} parent=1 // pred_check
      _
    $region3: #{_linear_relu_impl.1} parent=1 // pred_check_branch
      %11 = sbr.rel (0) target = $region5
    $region4: #{_linear_relu_impl.1} parent=1 // pred_region
      %s13 = ssub.s32 64, 64
      %14 = vsyncadd [#allocation3], %s13
      %s16 = sshll.u32 [#allocation2], 4
      %s17 = int_to_ptr.vmem [resolvable:$true] %s16
      %19 = dma.hbm_to_vmem [thread:$0]  %s0, 64, %s17, [#allocation3]
    $region5: #{_linear_relu_impl.1} parent=1 // pred_fallthru
      _
    // Predicated region
    $region6: #{_linear_relu_impl.1} parent=1 // pred_check
      _
    $region7: #{_linear_relu_impl.1} parent=1 // pred_check_branch
      %21 = sbr.rel (0) target = $region9
    $region8: #{_linear_relu_impl.1} parent=1 // pred_region
      %s23 = ssub.s32 448, 448
      %24 = vsyncadd [#allocation6], %s23
      %s25 = sshll.u32 [#allocation5], 4
      %s26 = int_to_ptr.vmem [resolvable:$true] %s25
      %31 = dma.hbm_to_vmem [thread:$0]  %s1, 448, %s26, [#allocation6], 64, 64, 4
    $region9: #{_linear_relu_impl.1} parent=1 // pred_fallthru
      _
    // Predicated region
    $region10: #{_linear_relu_impl.1} parent=1 // pred_check
      _
    $region11: #{_linear_relu_impl.1} parent=1 // pred_check_branch
      %33 = sbr.rel (0) target = $region13
    $region12: #{_linear_relu_impl.1} parent=1 // pred_region
      %34 = dma.done [#allocation3], 64
    $region13: #{_linear_relu_impl.1} parent=1 // pred_fallthru
      _
    // Predicated region
    $region14: #{_linear_relu_impl.1} parent=1 // pred_check
      _
    $region15: #{_linear_relu_impl.1} parent=1 // pred_check_branch
      %36 = sbr.rel (0) target = $region17
    $region16: #{_linear_relu_impl.1} parent=1 // pred_region
      %37 = dma.done [#allocation6], 448
    $region17: #{_linear_relu_impl.1} parent=1 // pred_fallthru
      _
    %v39 = vld [vmem:[#allocation2] sm:$0xf]
    %v40 = vld [vmem:[#allocation5] sm:$0xf]
    %v41 = vld [vmem:[#allocation5 + $0x4] sm:$0xf]
    %v42 = vld [vmem:[#allocation5 + $0x8] sm:$0xf]
    %v43 = vld [vmem:[#allocation5 + $0xc] sm:$0xf]
    %v44 = vld [vmem:[#allocation5 + $0x10] sm:$0xf]
    %v45 = vld [vmem:[#allocation5 + $0x14] sm:$0xf]
    %v46 = vld [vmem:[#allocation5 + $0x18] sm:$0x3]
    %v54 = vunpack.c.l.b16 %v40
    %v55 = vunpack.c.l.b16 %v41
    %v56 = vunpack.c.l.b16 %v42
    %v57 = vunpack.c.l.b16 %v43
    %v58 = vunpack.c.l.b16 %v44
    %v59 = vunpack.c.l.b16 %v45
    %v60 = vunpack.c.l.b16 %v46
    %v61 = vpack.c.b16 %v55, %v54
    %v62 = vpack.c.b16 %v57, %v56
    %v63 = vpack.c.b16 %v59, %v58
    %v64 = vpack.c.b16 %v60, %v60
    %vm68 = vcmask 424960
    %v70 = vsel %vm68, %v39, 0
    %vm72 = vcmask 1041408
    %v74 = vsel %vm72, %v64, 0
    %76 = vmatprep.subr.bf16.mxu0 0
    %77 = vmatpush1.bf16.msra.mxu0 %v61
    %78 = vmatprep.subr.bf16.mxu0 0
    %79 = vmatpush1.bf16.msra.mxu0 %v62
    %80 = vmatprep.subr.bf16.mxu0 0
    %81 = vmatpush1.bf16.msra.mxu0 %v63
    %82 = vmatprep.subr.bf16.mxu0 0
    %83 = vmatpush1.bf16.msra.mxu0 %v74
    %84 = vmatprep.subr.bf16.mxu0 0
    %85 = vmatpush1.bf16.msra.mxu0 0
    %86 = vmatprep.subr.bf16.mxu0 0
    %87 = vmatpush1.bf16.msra.mxu0 0
    %88 = vmatprep.subr.bf16.mxu0 0
    %89 = vmatpush1.bf16.msra.mxu0 0
    %90 = vmatprep.subr.bf16.mxu0 0
    %91 = vmatpush1.bf16.msra.mxu0 0
    %92 = vmatprep.subr.bf16.mxu0 0
    %93 = vmatpush1.bf16.msra.mxu0 0
    %94 = vmatprep.subr.bf16.mxu0 0
    %95 = vmatpush1.bf16.msra.mxu0 0
    %96 = vmatprep.subr.bf16.mxu0 0
    %97 = vmatpush1.bf16.msra.mxu0 0
    %98 = vmatprep.subr.bf16.mxu0 0
    %99 = vmatpush1.bf16.msra.mxu0 0
    %100 = vmatprep.subr.bf16.mxu0 0
    %101 = vmatpush1.bf16.msra.mxu0 0
    %102 = vmatprep.subr.bf16.mxu0 0
    %103 = vmatpush1.bf16.msra.mxu0 0
    %104 = vmatprep.subr.bf16.mxu0 0
    %105 = vmatpush1.bf16.msra.mxu0 0
    %106 = vmatprep.subr.bf16.mxu0 0
    %107 = vmatpush1.bf16.msra.mxu0 0
    %108 = vmatprep.mubr.bf16.mxu0 0
    %109 = vmatmul.mubr.bf16.gmra.mrb[0].mxu0 %v70
    %v110 = vpop.f32.mrb[0].mxu0
    %v111 = vadd.f32 0.0, %v110
    %v112 = vpop.f32.mrb[0].mxu0
    %v113 = vpop.f32.mrb[0].mxu0
    %v114 = vpop.f32.mrb[0].mxu0
    %115 = vdwg.mxu0
    %v116 = vmax.f32 %v111, 0.0
    %v117 = vpack.c.bf16 %v116, %v116
    %vm118 = vcmask 420864
    %119 = vst.msk [vmem:[#allocation7] sm:$0xf] %vm118, %v117
    // Predicated region
    $region18: #{_linear_relu_impl.1} parent=1 // pred_check
      _
    $region19: #{_linear_relu_impl.1} parent=1 // pred_check_branch
      %121 = sbr.rel (0) target = $region21
    $region20: #{_linear_relu_impl.1} parent=1 // pred_region
      %s123 = ssub.s32 64, 64
      %124 = vsyncadd [#allocation4], %s123
      %s126 = sshll.u32 [#allocation7], 4
      %s127 = int_to_ptr.vmem [resolvable:$true] %s126
      %129 = dma.vmem_to_hbm [thread:$0]  %s127, 64, %s2, [#allocation4]
    $region21: #{_linear_relu_impl.1} parent=1 // pred_fallthru
      _
    // Predicated region
    $region22: #{_linear_relu_impl.1} parent=1 // pred_check
      _
    $region23: #{_linear_relu_impl.1} parent=1 // pred_check_branch
      %131 = sbr.rel (0) target = $region25
    $region24: #{_linear_relu_impl.1} parent=1 // pred_region
      %132 = dma.done [#allocation4], 64
    $region25: #{_linear_relu_impl.1} parent=1 // pred_fallthru
      _
    %133 = vsyncpa [#allocation3], 1
    %134 = vsyncpa [#allocation6], 1
    %135 = vsyncpa [#allocation4], 1

</llo_original>
